<compile_context>
chip_gen: v7x
topology: tpu7x:2x2x1
jax: 0.10.0
libtpu: 0.0.40
codegen_flags: <defaults>
</compile_context>

<pallas_src>
import functools
import math

import jax
import jax.numpy as jnp
from jax import lax
from jax.experimental import pallas as pl
from jax.experimental.pallas import tpu as pltpu


# Tile preferences: first entry that divides the dim wins, else the full dim.
# 128-multiples are MXU/lane aligned on v5e/v6e/v7x.  On v7x (64 MiB VMEM)
# prefer the smaller K/N tiles; v5e/v6e (128 MiB VMEM) tolerate the larger
# ones.  All choices below stay well under the 48 MiB scoped-VMEM limit.
_TM_PREFS = (256, 128, 64, 32, 16, 8)
_TN_PREFS = (256, 128)
_TK_PREFS = (512, 256, 128)
_SEQ_PREFS = (128, 64, 32, 16, 8)
_VMEM_LIMIT = 48 * 1024 * 1024   # headroom below v7x's 64 MiB physical VMEM
_MASK_VALUE = -1e30


def _pick_tile(dim, prefs):
    for p in prefs:
        if dim % p == 0:
            return p
    return dim


def _cparams(*dim_sems):
    return pltpu.CompilerParams(dimension_semantics=dim_sems,
                                vmem_limit_bytes=_VMEM_LIMIT)


# ----------------------------- Pallas kernels ------------------------------

def _rms_matmul_kernel(x_ref, g_ref, w_ref, o_ref, *, eps):
    # o = (rmsnorm(x) * g) @ w   ; x: [tm, K], g: [1, K], w: [K, tn]
    x = x_ref[...].astype(jnp.float32)
    var = jnp.mean(x * x, axis=-1, keepdims=True)
    xn = (x * lax.rsqrt(var + eps) * g_ref[...].astype(jnp.float32)
          ).astype(x_ref.dtype)
    o_ref[...] = jnp.dot(xn, w_ref[...],
                         preferred_element_type=jnp.float32).astype(o_ref.dtype)


def _rms_gate_up_kernel(x_ref, g_ref, wg_ref, wu_ref, o_ref, *, eps):
    # o = silu((rmsnorm(x)*g) @ wg) * ((rmsnorm(x)*g) @ wu)
    # (IPEX linear_silu + linear_mul + post_attention_layernorm, fused)
    x = x_ref[...].astype(jnp.float32)
    var = jnp.mean(x * x, axis=-1, keepdims=True)
    xn = (x * lax.rsqrt(var + eps) * g_ref[...].astype(jnp.float32)
          ).astype(x_ref.dtype)
    gate = jnp.dot(xn, wg_ref[...], preferred_element_type=jnp.float32)
    up = jnp.dot(xn, wu_ref[...], preferred_element_type=jnp.float32)
    o_ref[...] = (up * (gate * jax.nn.sigmoid(gate))).astype(o_ref.dtype)


def _matmul_add_kernel(x_ref, w_ref, r_ref, o_ref, acc_ref):
    # o = x @ w + r   (IPEX _IPEXlinearAddRef), K tiled on grid axis 2.
    @pl.when(pl.program_id(2) == 0)
    def _():
        acc_ref[...] = jnp.zeros_like(acc_ref)

    acc_ref[...] += jnp.dot(x_ref[...], w_ref[...],
                            preferred_element_type=jnp.float32)

    @pl.when(pl.program_id(2) == pl.num_programs(2) - 1)
    def _():
        o_ref[...] = (acc_ref[...] + r_ref[...].astype(jnp.float32)
                      ).astype(o_ref.dtype)


def _rope(x, cos, sin):
    # rotate_half(x) = concat(-x2, x1); x/cos/sin are [T, Dh] f32.
    half = x.shape[-1] // 2
    rot = jnp.concatenate([-x[:, half:], x[:, :half]], axis=-1)
    return x * cos + rot * sin


def _flash_attn_kernel(q_ref, k_ref, v_ref, cq_ref, sq_ref, ck_ref, sk_ref,
                       o_ref, m_sc, l_sc, acc_sc, *, scale):
    qi = pl.program_id(2)
    ki = pl.program_id(3)
    tq = q_ref.shape[0]
    tkv = k_ref.shape[0]

    @pl.when(ki == 0)
    def _():
        m_sc[...] = jnp.full_like(m_sc, -jnp.inf)
        l_sc[...] = jnp.zeros_like(l_sc)
        acc_sc[...] = jnp.zeros_like(acc_sc)

    # Skip KV tiles that lie entirely above the causal diagonal.
    @pl.when(ki * tkv <= qi * tq + (tq - 1))
    def _():
        q = _rope(q_ref[...].astype(jnp.float32), cq_ref[...], sq_ref[...])
        k = _rope(k_ref[...].astype(jnp.float32), ck_ref[...], sk_ref[...])
        s = lax.dot_general(q.astype(q_ref.dtype), k.astype(k_ref.dtype),
                            (((1,), (1,)), ((), ())),
                            preferred_element_type=jnp.float32) * scale
        # Causal mask generated in-kernel (no [S, S] HBM mask traffic).
        row = qi * tq + lax.broadcasted_iota(jnp.int32, (tq, tkv), 0)
        col = ki * tkv + lax.broadcasted_iota(jnp.int32, (tq, tkv), 1)
        s = jnp.where(col <= row, s, _MASK_VALUE)

        m_prev = m_sc[...]
        m_new = jnp.maximum(m_prev, jnp.max(s, axis=-1, keepdims=True))
        alpha = jnp.exp(m_prev - m_new)
        p = jnp.exp(s - m_new)
        l_sc[...] = alpha * l_sc[...] + jnp.sum(p, axis=-1, keepdims=True)
        acc_sc[...] = alpha * acc_sc[...] + jnp.dot(
            p.astype(v_ref.dtype), v_ref[...],
            preferred_element_type=jnp.float32)
        m_sc[...] = m_new

    @pl.when(ki == pl.num_programs(3) - 1)
    def _():
        inv_l = pl.reciprocal(l_sc[...], approx=True)
        o_ref[...] = (acc_sc[...] * inv_l).astype(o_ref.dtype)


# ----------------------------- wrappers (glue) ------------------------------

def fused_rmsnorm_matmul(x, gamma, w, *, eps):
    """o = (rmsnorm(x) * gamma) @ w   -- norm fused into the projection."""
    M, K = x.shape
    N = w.shape[1]
    tm = _pick_tile(M, _TM_PREFS)
    tn = _pick_tile(N, _TN_PREFS)
    return pl.pallas_call(
        functools.partial(_rms_matmul_kernel, eps=eps),
        grid=(M // tm, N // tn),
        in_specs=[
            pl.BlockSpec((tm, K), lambda i, j: (i, 0)),
            pl.BlockSpec((1, K), lambda i, j: (0, 0)),
            pl.BlockSpec((K, tn), lambda i, j: (0, j)),
        ],
        out_specs=pl.BlockSpec((tm, tn), lambda i, j: (i, j)),
        out_shape=jax.ShapeDtypeStruct((M, N), x.dtype),
        compiler_params=_cparams("parallel", "parallel"),
    )(x, gamma, w)


def fused_rmsnorm_gate_up(x, gamma, w_gate, w_up, *, eps):
    """o = silu((rmsnorm(x)*gamma) @ w_gate) * ((rmsnorm(x)*gamma) @ w_up)."""
    M, K = x.shape
    N = w_gate.shape[1]
    tm = _pick_tile(M, _TM_PREFS)
    tn = _pick_tile(N, _TN_PREFS)
    return pl.pallas_call(
        functools.partial(_rms_gate_up_kernel, eps=eps),
        grid=(M // tm, N // tn),
        in_specs=[
            pl.BlockSpec((tm, K), lambda i, j: (i, 0)),
            pl.BlockSpec((1, K), lambda i, j: (0, 0)),
            pl.BlockSpec((K, tn), lambda i, j: (0, j)),
            pl.BlockSpec((K, tn), lambda i, j: (0, j)),
        ],
        out_specs=pl.BlockSpec((tm, tn), lambda i, j: (i, j)),
        out_shape=jax.ShapeDtypeStruct((M, N), x.dtype),
        compiler_params=_cparams("parallel", "parallel"),
    )(x, gamma, w_gate, w_up)


def matmul_residual_add(x, w, residual):
    """o = x @ w + residual, tiled (M, N, K) with f32 VMEM accumulator."""
    M, K = x.shape
    N = w.shape[1]
    tm = _pick_tile(M, _TM_PREFS)
    tn = _pick_tile(N, _TN_PREFS)
    tk = _pick_tile(K, _TK_PREFS)
    # NOTE: input_output_aliases={2: 0} could additionally donate the residual
    # buffer as the output; omitted to keep the demo portable.
    return pl.pallas_call(
        _matmul_add_kernel,
        grid=(M // tm, N // tn, K // tk),
        in_specs=[
            pl.BlockSpec((tm, tk), lambda i, j, k: (i, k)),
            pl.BlockSpec((tk, tn), lambda i, j, k: (k, j)),
            pl.BlockSpec((tm, tn), lambda i, j, k: (i, j)),
        ],
        out_specs=pl.BlockSpec((tm, tn), lambda i, j, k: (i, j)),
        out_shape=jax.ShapeDtypeStruct((M, N), residual.dtype),
        scratch_shapes=[pltpu.VMEM((tm, tn), jnp.float32)],
        compiler_params=_cparams("parallel", "parallel", "arbitrary"),
    )(x, w, residual)


def flash_attention(qkv, cos, sin, *, batch, seq, num_heads, head_dim,
                    out_dtype):
    """Causal flash attention over the packed [B*S, 3H] QKV slab.

    q/k/v head tiles are sliced straight out of `qkv` by BlockSpec column
    indices (q: h, k: nH+h, v: 2*nH+h), and the output is written directly in
    [B*S, H] layout ready for o_proj -- no reshape/transpose HBM round trips.
    """
    B, S, nH, Dh = batch, seq, num_heads, head_dim
    M, H = B * S, nH * Dh
    tq = _pick_tile(S, _SEQ_PREFS)
    tkv = _pick_tile(S, _SEQ_PREFS)
    nq, nkv = S // tq, S // tkv
    scale = 1.0 / math.sqrt(Dh)

    q_spec = pl.BlockSpec((tq, Dh), lambda b, h, qi, ki: (b * nq + qi, h))
    k_spec = pl.BlockSpec((tkv, Dh), lambda b, h, qi, ki: (b * nkv + ki, nH + h))
    v_spec = pl.BlockSpec((tkv, Dh),
                          lambda b, h, qi, ki: (b * nkv + ki, 2 * nH + h))
    cq_spec = pl.BlockSpec((tq, Dh), lambda b, h, qi, ki: (qi, 0))
    ck_spec = pl.BlockSpec((tkv, Dh), lambda b, h, qi, ki: (ki, 0))
    o_spec = pl.BlockSpec((tq, Dh), lambda b, h, qi, ki: (b * nq + qi, h))

    return pl.pallas_call(
        functools.partial(_flash_attn_kernel, scale=scale),
        grid=(B, nH, nq, nkv),
        in_specs=[q_spec, k_spec, v_spec, cq_spec, cq_spec, ck_spec, ck_spec],
        out_specs=o_spec,
        out_shape=jax.ShapeDtypeStruct((M, H), out_dtype),
        scratch_shapes=[
            pltpu.VMEM((tq, 1), jnp.float32),   # running max
            pltpu.VMEM((tq, 1), jnp.float32),   # running denominator
            pltpu.VMEM((tq, Dh), jnp.float32),  # output accumulator
        ],
        compiler_params=_cparams("parallel", "parallel", "parallel",
                                 "arbitrary"),
    )(qkv, qkv, qkv, cos, sin, cos, sin)


# ------------------------- params / decoder forward -------------------------

def make_rope(seq_len, head_dim, base=10000.0):
    # RoPE tables kept in f32 (cast happens after the multiply in-kernel).
    inv_freq = 1.0 / (base ** (jnp.arange(0, head_dim, 2, dtype=jnp.float32)
                               / head_dim))
    pos = jnp.arange(seq_len, dtype=jnp.float32)
    freqs = jnp.outer(pos, inv_freq)                 # [S, Dh/2]
    emb = jnp.concatenate([freqs, freqs], axis=-1)   # [S, Dh]
    return jnp.cos(emb), jnp.sin(emb)


def pack_decoder_params(raw, compute_dtype=jnp.bfloat16):
    """One-time weight packing (load time, NOT per forward pass):
      * torch [out, in] -> [in, out] so kernels do x @ W (no HBM transpose
        per call),
      * q/k/v fused into a single [H, 3H] projection weight,
      * weights in bf16 for native MXU rate (f32 accumulation in-kernel).
    """
    def t(w):
        return jnp.asarray(w).T.astype(compute_dtype)

    return {
        "num_heads": raw["num_heads"],
        "rms_eps": raw["rms_eps"],
        "ln_in": jnp.asarray(raw["input_layernorm"]).reshape(1, -1)
                    .astype(jnp.float32),
        "ln_post": jnp.asarray(raw["post_attention_layernorm"]).reshape(1, -1)
                      .astype(jnp.float32),
        "w_qkv": jnp.concatenate(
            [jnp.asarray(raw["q_proj"]), jnp.asarray(raw["k_proj"]),
             jnp.asarray(raw["v_proj"])], axis=0).T.astype(compute_dtype),
        "w_o": t(raw["o_proj"]),
        "w_gate": t(raw["gate_proj"]),
        "w_up": t(raw["up_proj"]),
        "w_down": t(raw["down_proj"]),
    }


def llama_decoder_layer_forward(params, hidden_states, attention_mask=None):
    """IPEX-fused LlamaDecoderLayer forward (non-distributed path,
    use_cache=False, output_attentions=False).  Returns (hidden_states,).
    """
    # TODO(synk): padded / custom additive attention_mask blocks are not
    # plumbed into the flash kernel (standard causal, unpadded case only).
    # TODO(synk): GPTJ / OPT backbone branches of _IPEXDecoderLayerRef and the
    # KV-cache (use_cache=True) decode path are not implemented.
    del attention_mask
    B, S, H = hidden_states.shape
    nH = params["num_heads"]
    Dh = H // nH
    eps = params["rms_eps"]
    x2d = hidden_states.reshape(B * S, H)

    # --- attention block: rmsnorm + fused QKV -> RoPE + causal flash SDPA
    #     -> o_proj + residual (mha_linear_add) ---
    qkv = fused_rmsnorm_matmul(x2d, params["ln_in"], params["w_qkv"], eps=eps)
    cos, sin = make_rope(S, Dh)
    attn = flash_attention(qkv, cos, sin, batch=B, seq=S, num_heads=nH,
                           head_dim=Dh, out_dtype=x2d.dtype)
    h = matmul_residual_add(attn, params["w_o"], x2d)

    # --- MLP block: rmsnorm + silu(gate)*up fused -> down_proj + residual ---
    mlp_gate = fused_rmsnorm_gate_up(h, params["ln_post"], params["w_gate"],
                                     params["w_up"], eps=eps)
    out = matmul_residual_add(mlp_gate, params["w_down"], h)

    return (out.reshape(B, S, H),)


# --------------------------------- main --------------------------------------

if __name__ == "__main__":
    # Small but TPU-layout-friendly shapes: head_dim = 128 (lane aligned).
    B, S, H, nH, I = 2, 8, 256, 2, 512
    Dh = H // nH
    param_dtype = jnp.float32
    compute_dtype = jnp.bfloat16

    key = jax.random.PRNGKey(0)
    ks = jax.random.split(key, 10)

    raw = {
        "num_heads": nH,
        "rms_eps": 1e-6,
        "input_layernorm": 1.0 + 0.01 * jax.random.normal(ks[0], (H,), param_dtype),
        "post_attention_layernorm": 1.0 + 0.01 * jax.random.normal(ks[1], (H,), param_dtype),
        # torch nn.Linear convention: weight is [out_features, in_features], no bias.
        "q_proj": 0.05 * jax.random.normal(ks[2], (H, H), param_dtype),
        "k_proj": 0.05 * jax.random.normal(ks[3], (H, H), param_dtype),
        "v_proj": 0.05 * jax.random.normal(ks[4], (H, H), param_dtype),
        "o_proj": 0.05 * jax.random.normal(ks[5], (H, H), param_dtype),
        "gate_proj": 0.05 * jax.random.normal(ks[6], (I, H), param_dtype),
        "up_proj": 0.05 * jax.random.normal(ks[7], (I, H), param_dtype),
        "down_proj": 0.05 * jax.random.normal(ks[8], (H, I), param_dtype),
    }
    params = pack_decoder_params(raw, compute_dtype=compute_dtype)

    hidden_states = (0.5 * jax.random.normal(ks[9], (B, S, H), param_dtype)
                     ).astype(compute_dtype)

    outputs = llama_decoder_layer_forward(params, hidden_states)
    out = jax.block_until_ready(outputs[0])
    assert out.shape == (B, S, H)
    assert bool(jnp.all(jnp.isfinite(out.astype(jnp.float32))))
    print("KERNEL_OK")
</pallas_src>

<mosaic_0001>
module attributes {stable_mosaic.version = 11 : i64} {
  func.func @_rms_matmul_kernel(%arg0: i32, %arg1: i32, %arg2: memref<16x256xbf16, #tpu.memory_space<vmem>>, %arg3: memref<1x256xf32, #tpu.memory_space<vmem>>, %arg4: memref<256x256xbf16, #tpu.memory_space<vmem>>, %arg5: memref<16x256xbf16, #tpu.memory_space<vmem>>) attributes {dimension_semantics = [#tpu.dimension_semantics<parallel>, #tpu.dimension_semantics<parallel>], iteration_bounds = array<i64: 1, 3>, scalar_prefetch = 0 : i64, scratch_operands = 0 : i64, tpu.core_type = #tpu.core_type<tc>, window_params = [{transform_indices = @transform_0, window_bounds = array<i64: 16, 256>}, {pipeline_mode = #tpu.pipeline_mode<synchronous>, transform_indices = @transform_1, window_bounds = array<i64: 1, 256>}, {transform_indices = @transform_2, window_bounds = array<i64: 256, 256>}, {transform_indices = @transform_3, window_bounds = array<i64: 16, 256>}]} {
    %c0 = arith.constant 0 : index
    %c0_0 = arith.constant 0 : index
    %0 = vector.load %arg2[%c0, %c0_0] : memref<16x256xbf16, #tpu.memory_space<vmem>>, vector<16x256xbf16>
    %1 = arith.extf %0 : vector<16x256xbf16> to vector<16x256xf32>
    %2 = arith.mulf %1, %1 : vector<16x256xf32>
    %cst = arith.constant dense<0.000000e+00> : vector<16xf32>
    %3 = vector.multi_reduction <add>, %2, %cst [1] : vector<16x256xf32> to vector<16xf32>
    %4 = vector.shape_cast %3 : vector<16xf32> to vector<16x1xf32>
    %cst_1 = arith.constant 2.560000e+02 : f32
    %5 = vector.broadcast %cst_1 : f32 to vector<16x1xf32>
    %6 = arith.divf %4, %5 : vector<16x1xf32>
    %cst_2 = arith.constant 9.99999997E-7 : f32
    %7 = vector.broadcast %cst_2 : f32 to vector<16x1xf32>
    %8 = arith.addf %6, %7 : vector<16x1xf32>
    %9 = math.rsqrt %8 : vector<16x1xf32>
    %10 = vector.broadcast %9 : vector<16x1xf32> to vector<16x256xf32>
    %11 = arith.mulf %1, %10 : vector<16x256xf32>
    %c0_3 = arith.constant 0 : index
    %c0_4 = arith.constant 0 : index
    %12 = vector.load %arg3[%c0_3, %c0_4] : memref<1x256xf32, #tpu.memory_space<vmem>>, vector<1x256xf32>
    %13 = vector.broadcast %12 : vector<1x256xf32> to vector<16x256xf32>
    %14 = arith.mulf %11, %13 : vector<16x256xf32>
    %15 = arith.truncf %14 : vector<16x256xf32> to vector<16x256xbf16>
    %c0_5 = arith.constant 0 : index
    %c0_6 = arith.constant 0 : index
    %16 = vector.load %arg4[%c0_5, %c0_6] : memref<256x256xbf16, #tpu.memory_space<vmem>>, vector<256x256xbf16>
    %cst_7 = arith.constant dense<0.000000e+00> : vector<16x256xf32>
    %17 = tpu.matmul %15, %16, %cst_7 {dimension_numbers = #tpu.dot_dimension_numbers<[1], [0], [0], [1], [0, 0, 1, 1], [], []>} : vector<16x256xbf16>, vector<256x256xbf16>, vector<16x256xf32> -> vector<16x256xf32>
    %18 = arith.truncf %17 : vector<16x256xf32> to vector<16x256xbf16>
    %c0_8 = arith.constant 0 : index
    %c0_9 = arith.constant 0 : index
    %19 = vector.load %arg5[%c0_8, %c0_9] : memref<16x256xbf16, #tpu.memory_space<vmem>>, vector<16x256xbf16>
    tpu.vector_store %arg5[%c0_8, %c0_9], %18 {strides = array<i32>} : memref<16x256xbf16, #tpu.memory_space<vmem>>, vector<16x256xbf16>,
    return
  }
  func.func @transform_0(%arg0: i32, %arg1: i32) -> (i32, i32) {
    %c0_i32 = arith.constant 0 : i32
    %c0_i32_0 = arith.constant 0 : i32
    return %arg0, %c0_i32 : i32, i32
  }
  func.func @transform_1(%arg0: i32, %arg1: i32) -> (i32, i32) {
    %c0_i32 = arith.constant 0 : i32
    %c0_i32_0 = arith.constant 0 : i32
    %c0_i32_1 = arith.constant 0 : i32
    return %c0_i32, %c0_i32_0 : i32, i32
  }
  func.func @transform_2(%arg0: i32, %arg1: i32) -> (i32, i32) {
    %c0_i32 = arith.constant 0 : i32
    %c0_i32_0 = arith.constant 0 : i32
    return %c0_i32, %arg1 : i32, i32
  }
  func.func @transform_3(%arg0: i32, %arg1: i32) -> (i32, i32) {
    %c0_i32 = arith.constant 0 : i32
    return %arg0, %arg1 : i32, i32
  }
}

</mosaic_0001>

<llo_original>
// kernel: tpu_custom_call.1
$region0: #{tpu_custom_call.1}
  #allocation0 [shape = 'u32[]', space=smem, size = 0x4, offset = 0x4, fixed_abs, tag = 'smem constant byte address 0x4 - core index']
  #allocation1 [shape = 'u32[144,128]{1,0:T(1,128)}', space=vmem, size = 0x12000, scoped, tag = 'internal scratch']
  %s0 = inlined_call_operand.hbm [shape: bf16[16,256], index: 0, kind: input, shape index: {}]
  %s1 = inlined_call_operand.vmem [shape: f32[1,256], index: 1, kind: input, shape index: {}]
  %s2 = inlined_call_operand.hbm [shape: bf16[256,768], index: 2, kind: input, shape index: {}]
  %s3 = inlined_call_operand.hbm [shape: bf16[16,768], index: 3, kind: output, shape index: {}]
  %s4 = sld [smem:[#allocation0]]
  $region53: #{tpu_custom_call.1} parent=0
    _
  %s6 = ssub.s32 1, %s4
  %s7 = scalar_select 0, %s6, %s4
  $region1: #{tpu_custom_call.1} parent=0
    #allocation2 [shape = 'u8[8192]{0}', space=vmem, size = 0x2000, scoped, tag = 'input window, operand 0, single buffered']
    #allocation3 [shape = 's32[2]{0}', space=sflag, size = 0x8, scoped, tag = 'scoped memory for tpu_custom_call.1']
    #allocation4 [shape = 's32[2]{0}', space=sflag, size = 0x8, scoped, tag = 'scoped memory for tpu_custom_call.1']
    #allocation5 [shape = 'u8[262144]{0}', space=vmem, size = 0x40000, scoped, tag = 'input window, operand 2']
    #allocation6 [shape = 's32[2]{0}', space=sflag, size = 0x8, scoped, tag = 'scoped memory for tpu_custom_call.1']
    #allocation7 [shape = 'u8[16384]{0}', space=vmem, size = 0x4000, scoped, tag = 'output window, operand 0']
    %8 = vsyncpa [#allocation3], 0
    %9 = vsyncpa [#allocation6], 0
    %s10 = scalar_lea.sflag [#allocation6], 1
    %11 = vsyncpa %s10, 0
    %12 = vsyncpa [#allocation4], 0
    %s13 = scalar_lea.sflag [#allocation4], 1
    %14 = vsyncpa %s13, 0
    loop: start=0, step=1, limit=5
    $region2: #{tpu_custom_call.1} parent=1 // loop_pre_header
      _
    $region3: #{tpu_custom_call.1} parent=1 // loop_header
      %s16 = sphi 0, %s20
      %p17 = scmp.ge.s32.totalorder %s16, 5
      %s23 = sphi 0, %s35
      %s24 = sphi 0, %s31
      %s25 = sphi 0, %s23
      %s26 = sphi 0, %s24
      %s27 = sphi 0, %s25
      %s28 = sphi 0, %s26
      %s38 = sphi 0, %s40
      %s41 = sphi 0, %s38
      %s42 = sphi 0, %s41
      %s58 = sphi 0, %s42
      %s62 = sphi 0, %s62
      %s64 = sphi 0, %s62
      %s65 = sphi 0, %s64
      %s79 = sphi 0, %s65
      %s85 = sphi 0, %s87
      %s88 = sphi 0, %s85
      %s89 = sphi 0, %s88
      %s105 = sphi 0, %s89
      %s113 = sphi 0, %s115
      %s116 = sphi 0, %s113
      %s117 = sphi 0, %s116
      %s133 = sphi 0, %s117
    $region4: #{tpu_custom_call.1} parent=1 // loop_header_branch
      %19 = sbr.rel (%p17) target = $region8
    $region5: #{tpu_custom_call.1} parent=1 // loop_body
      %s21 = ssub.s32 %s16, 1
      %s22 = ssub.s32 %s16, 2
      %s29 = sadd.s32 1, %s24
      %p30 = scmp.ge.s32.totalorder %s29, 3
      %s31 = scalar_select %p30, 0, %s29
      %s32 = sadd.s32 1, %s23
      %s33 = scalar_select %p30, %s32, %s23
      %p34 = scmp.ge.s32.totalorder %s33, 1
      %s35 = scalar_select %p34, 0, %s33
      %s36 = ssub.s32 %s23, %s35
      %p37 = scmp.eq.s32.totalorder %s36, 0
      %s39 = sadd.s32 %s38, 1
      %s40 = scalar_select %p37, %s38, %s39
      %p43 = pneg %p37
      %p44 = scmp.eq.s32.totalorder %s16, 2
      %p45 = por %p43, %p44
      %p46 = scmp.ne.s32.totalorder %s38, %s41
      %p47 = scmp.eq.s32.totalorder %s16, 0
      %p48 = por %p46, %p47
      %p49 = scmp.ne.s32.totalorder %s38, %s41
      %p50 = scmp.eq.s32.totalorder %s21, 2
      %p51 = por %p49, %p50
      %p52 = scmp.ne.s32.totalorder %s41, %s42
      %p53 = scmp.eq.s32.totalorder %s21, 0
      %p54 = por %p52, %p53
      %p55 = scmp.ne.s32.totalorder %s41, %s42
      %p56 = scmp.eq.s32.totalorder %s22, 2
      %p57 = por %p55, %p56
      %p59 = scmp.ne.s32.totalorder %s42, %s58
      %p60 = scmp.eq.s32.totalorder %s22, 0
      %p61 = por %p59, %p60
      %s63 = sadd.s32 %s62, 1
      %p66 = scmp.eq.s32.totalorder %s16, 2
      %p67 = scmp.ne.s32.totalorder %s62, %s64
      %p68 = scmp.eq.s32.totalorder %s16, 0
      %p69 = por %p67, %p68
      %p70 = scmp.ne.s32.totalorder %s62, %s64
      %p71 = scmp.eq.s32.totalorder %s21, 2
      %p72 = por %p70, %p71
      %p73 = scmp.ne.s32.totalorder %s64, %s65
      %p74 = scmp.eq.s32.totalorder %s21, 0
      %p75 = por %p73, %p74
      %p76 = scmp.ne.s32.totalorder %s64, %s65
      %p77 = scmp.eq.s32.totalorder %s22, 2
      %p78 = por %p76, %p77
      %p80 = scmp.ne.s32.totalorder %s65, %s79
      %p81 = scmp.eq.s32.totalorder %s22, 0
      %p82 = por %p80, %p81
      %s83 = ssub.s32 %s24, %s31
      %p84 = scmp.eq.s32.totalorder %s83, 0
      %s86 = sadd.s32 %s85, 1
      %s87 = scalar_select %p84, %s85, %s86
      %p90 = pneg %p84
      %p91 = scmp.eq.s32.totalorder %s16, 2
      %p92 = por %p90, %p91
      %p93 = scmp.ne.s32.totalorder %s85, %s88
      %p94 = scmp.eq.s32.totalorder %s16, 0
      %p95 = por %p93, %p94
      %p96 = scmp.ne.s32.totalorder %s85, %s88
      %p97 = scmp.eq.s32.totalorder %s21, 2
      %p98 = por %p96, %p97
      %p99 = scmp.ne.s32.totalorder %s88, %s89
      %p100 = scmp.eq.s32.totalorder %s21, 0
      %p101 = por %p99, %p100
      %p102 = scmp.ne.s32.totalorder %s88, %s89
      %p103 = scmp.eq.s32.totalorder %s22, 2
      %p104 = por %p102, %p103
      %p106 = scmp.ne.s32.totalorder %s89, %s105
      %p107 = scmp.eq.s32.totalorder %s22, 0
      %p108 = por %p106, %p107
      %s109 = ssub.s32 %s23, %s35
      %s110 = ssub.s32 %s24, %s31
      %s111 = sor.u32 %s109, %s110
      %p112 = scmp.eq.s32.totalorder %s111, 0
      %s114 = sadd.s32 %s113, 1
      %s115 = scalar_select %p112, %s113, %s114
      %p118 = pneg %p112
      %p119 = scmp.eq.s32.totalorder %s16, 2
      %p120 = por %p118, %p119
      %p121 = scmp.ne.s32.totalorder %s113, %s116
      %p122 = scmp.eq.s32.totalorder %s16, 0
      %p123 = por %p121, %p122
      %p124 = scmp.ne.s32.totalorder %s113, %s116
      %p125 = scmp.eq.s32.totalorder %s21, 2
      %p126 = por %p124, %p125
      %p127 = scmp.ne.s32.totalorder %s116, %s117
      %p128 = scmp.eq.s32.totalorder %s21, 0
      %p129 = por %p127, %p128
      %p130 = scmp.ne.s32.totalorder %s116, %s117
      %p131 = scmp.eq.s32.totalorder %s22, 2
      %p132 = por %p130, %p131
      %p134 = scmp.ne.s32.totalorder %s117, %s133
      %p135 = scmp.eq.s32.totalorder %s22, 0
      %p136 = por %p134, %p135
      %p137 = scmp.le.s32.totalorder 1, %s16
      %p138 = scmp.lt.s32.totalorder %s16, 4
      %p139 = pnand %p137, %p138
      %p140 = pneg %p139
      // Predicated region
      $region9: #{tpu_custom_call.1} parent=5 // pred_check
        _
      $region10: #{tpu_custom_call.1} parent=5 // pred_check_branch
        %142 = sbr.rel (%p139) target = $region12
      $region11: #{tpu_custom_call.1} parent=5 // pred_region
        %s143 = ssub.s32 %s16, 1
        // Predicated region
        $region13: #{tpu_custom_call.1} parent=11 // pred_check
          %p144 = pneg %p54
        $region14: #{tpu_custom_call.1} parent=11 // pred_check_branch
          %146 = sbr.rel (%p144) target = $region16
        $region15: #{tpu_custom_call.1} parent=11 // pred_region
          %s147 = smul.u32 2, %s25
          %s149 = ssub.s32 256, 256
          %150 = vsyncadd [#allocation3], %s149
          %s151 = smul.addr %s147, 2
          %s152 = smul.addr %s151, 64
          %s153 = scalar_lea.hbm %s0, %s152
          %s154 = sshll.u32 [#allocation2], 4
          %s155 = int_to_ptr.vmem [resolvable:$true] %s154
          %160 = dma.hbm_to_vmem [thread:$0]  %s153, 256, %s155, [#allocation3], 128, 128, 8
        $region16: #{tpu_custom_call.1} parent=11 // pred_fallthru
          _
        // Predicated region
        $region17: #{tpu_custom_call.1} parent=11 // pred_check
          %p161 = pneg %p75
        $region18: #{tpu_custom_call.1} parent=11 // pred_check_branch
          %163 = sbr.rel (%p161) target = $region20
        $region19: #{tpu_custom_call.1} parent=11 // pred_region
          _
        $region20: #{tpu_custom_call.1} parent=11 // pred_fallthru
          _
      $region12: #{tpu_custom_call.1} parent=5 // pred_fallthru
        _
      %p164 = scmp.lt.s32.totalorder %s16, 3
      // Predicated region
      $region21: #{tpu_custom_call.1} parent=5 // pred_check
        %p165 = pneg %p164
      $region22: #{tpu_custom_call.1} parent=5 // pred_check_branch
        %167 = sbr.rel (%p165) target = $region24
      $region23: #{tpu_custom_call.1} parent=5 // pred_region
        // Predicated region
        $region25: #{tpu_custom_call.1} parent=23 // pred_check
          %p168 = pneg %p95
        $region26: #{tpu_custom_call.1} parent=23 // pred_check_branch
          %170 = sbr.rel (%p168) target = $region28
        $region27: #{tpu_custom_call.1} parent=23 // pred_region
          %s171 = sand.u32 %s85, 1
          %s172 = scalar_lea.sflag [#allocation6], %s171
          %s173 = sand.u32 %s85, 1
          %s174 = smul.addr %s173, 256
          %s175 = scalar_lea.vmem [#allocation5], %s174
          %s176 = smul.u32 2, %s24
          %s178 = ssub.s32 4096, 4096
          %179 = vsyncadd %s172, %s178
          %s180 = smul.addr %s176, 64
          %s181 = scalar_lea.hbm %s2, %s180
          %s182 = sshll.u32 %s175, 4
          %s183 = int_to_ptr.vmem [resolvable:$true] %s182
          %188 = dma.hbm_to_vmem [thread:$0]  %s181, 4096, %s183, %s172, 384, 128, 8
        $region28: #{tpu_custom_call.1} parent=23 // pred_fallthru
          _
      $region24: #{tpu_custom_call.1} parent=5 // pred_fallthru
        _
      %p189 = scmp.le.s32.totalorder 1, %s16
      %p190 = scmp.lt.s32.totalorder %s16, 4
      %p191 = pnand %p189, %p190
      %p192 = pneg %p191
      // Predicated region
      $region29: #{tpu_custom_call.1} parent=5 // pred_check
        _
      $region30: #{tpu_custom_call.1} parent=5 // pred_check_branch
        %194 = sbr.rel (%p191) target = $region32
      $region31: #{tpu_custom_call.1} parent=5 // pred_region
        %s195 = ssub.s32 %s16, 1
        // Predicated region
        $region33: #{tpu_custom_call.1} parent=31 // pred_check
          %p196 = pneg %p54
        $region34: #{tpu_custom_call.1} parent=31 // pred_check_branch
          %198 = sbr.rel (%p196) target = $region36
        $region35: #{tpu_custom_call.1} parent=31 // pred_region
          %199 = dma.done [#allocation3], 256
        $region36: #{tpu_custom_call.1} parent=31 // pred_fallthru
          _
        %s200 = sand.u32 %s88, 1
        %s201 = scalar_lea.sflag [#allocation6], %s200
        %s202 = sand.u32 %s88, 1
        %s203 = smul.addr %s202, 256
        %s204 = scalar_lea.vmem [#allocation5], %s203
        // Predicated region
        $region37: #{tpu_custom_call.1} parent=31 // pred_check
          %p205 = pneg %p101
        $region38: #{tpu_custom_call.1} parent=31 // pred_check_branch
          %207 = sbr.rel (%p205) target = $region40
        $region39: #{tpu_custom_call.1} parent=31 // pred_region
          %208 = dma.done %s201, 4096
        $region40: #{tpu_custom_call.1} parent=31 // pred_fallthru
          _
        %p209 = pneg %p54
        %p210 = pneg %p51
        %p211 = pneg %p75
        %p212 = pneg %p72
        %s213 = sand.u32 %s88, 1
        %s214 = scalar_lea.sflag [#allocation6], %s213
        %s215 = sand.u32 %s88, 1
        %s216 = smul.addr %s215, 256
        %s217 = scalar_lea.vmem [#allocation5], %s216
        %p218 = pneg %p101
        %p219 = pneg %p98
        %p220 = pneg %p129
        %p221 = pneg %p126
        %s222 = sand.u32 %s116, 1
        %s223 = scalar_lea.sflag [#allocation4], %s222
        %s224 = sand.u32 %s116, 1
        %s225 = smul.addr %s224, 16
        %s226 = scalar_lea.vmem [#allocation7], %s225
        %s227 = smul.u32 2, %s25
        %s228 = smul.u32 2, %s26
        %s229 = smul.u32 2, %s25
        %s230 = smul.u32 2, %s26
        %v231 = vld [vmem:[#allocation2] sm:$0xff]
        %v232 = vld [vmem:[#allocation2 + $0x8] sm:$0xff]
        %v233 = vunpack.c.l.bf16 %v231
        %v234 = vunpack.c.h.bf16 %v231
        %v235 = vunpack.c.l.bf16 %v232
        %v236 = vunpack.c.h.bf16 %v232
        %v237 = vmul.f32 %v233, %v233
        %v238 = vmul.f32 %v234, %v234
        %v239 = vmul.f32 %v235, %v235
        %v240 = vmul.f32 %v236, %v236
        %v241 = vadd.f32 %v237, %v238
        %242 = vadd.xlane.f32.xlu0 %v241
        %v243 = vpop.xlane.xlu0 %242
        %v244 = vadd.f32 %v239, %v240
        %245 = vadd.xlane.f32.xlu0 %v244
        %v246 = vpop.xlane.xlu0 %245
        %v247 = vrcp.pop 256.0
        %v248 = vmul.f32 %v243, %v247
        %v249 = vmul.f32 %v246, %v247
        %v250 = vadd.f32 %v248, 1e-06
        %v251 = vadd.f32 %v249, 1e-06
        %v252 = vrsqrt.pop %v250
        %v253 = vrsqrt.pop %v251
        %v254 = vmul.f32 %v233, %v252
        %v255 = vmul.f32 %v234, %v252
        %v256 = vmul.f32 %v235, %v253
        %v257 = vmul.f32 %v236, %v253
        %v258 = vld [vmem:[%s1] sm:$0x3]
        %v260 = vlaneseq
        %v261 = vshrl.u32 %v260, 7
        %v262 = vsub.s32 0, %v261
        %v263 = vrot.slane %v258, %v262
        %v264 = vlaneseq
        %v265 = vshrl.u32 %v264, 7
        %v266 = vsub.s32 1, %v265
        %v267 = vrot.slane %v258, %v266
        %v270 = vmul.f32 %v254, %v263
        %v271 = vmul.f32 %v255, %v267
        %v272 = vmul.f32 %v256, %v263
        %v273 = vmul.f32 %v257, %v267
        %v274 = vpack.c.bf16 %v272, %v270
        %v275 = vpack.c.bf16 %v273, %v271
        %v276 = vld [vmem:[%s204] sm:$0xff]
        %v277 = vld [vmem:[%s204 + $0x8] sm:$0xff]
        %v278 = vld [vmem:[%s204 + $0x10] sm:$0xff]
        %v279 = vld [vmem:[%s204 + $0x18] sm:$0xff]
        %v280 = vld [vmem:[%s204 + $0x20] sm:$0xff]
        %v281 = vld [vmem:[%s204 + $0x28] sm:$0xff]
        %v282 = vld [vmem:[%s204 + $0x30] sm:$0xff]
        %v283 = vld [vmem:[%s204 + $0x38] sm:$0xff]
        %v284 = vld [vmem:[%s204 + $0x40] sm:$0xff]
        %v285 = vld [vmem:[%s204 + $0x48] sm:$0xff]
        %v286 = vld [vmem:[%s204 + $0x50] sm:$0xff]
        %v287 = vld [vmem:[%s204 + $0x58] sm:$0xff]
        %v288 = vld [vmem:[%s204 + $0x60] sm:$0xff]
        %v289 = vld [vmem:[%s204 + $0x68] sm:$0xff]
        %v290 = vld [vmem:[%s204 + $0x70] sm:$0xff]
        %v291 = vld [vmem:[%s204 + $0x78] sm:$0xff]
        %v292 = vld [vmem:[%s204 + $0x80] sm:$0xff]
        %v293 = vld [vmem:[%s204 + $0x88] sm:$0xff]
        %v294 = vld [vmem:[%s204 + $0x90] sm:$0xff]
        %v295 = vld [vmem:[%s204 + $0x98] sm:$0xff]
        %v296 = vld [vmem:[%s204 + $0xa0] sm:$0xff]
        %v297 = vld [vmem:[%s204 + $0xa8] sm:$0xff]
        %v298 = vld [vmem:[%s204 + $0xb0] sm:$0xff]
        %v299 = vld [vmem:[%s204 + $0xb8] sm:$0xff]
        %v300 = vld [vmem:[%s204 + $0xc0] sm:$0xff]
        %v301 = vld [vmem:[%s204 + $0xc8] sm:$0xff]
        %v302 = vld [vmem:[%s204 + $0xd0] sm:$0xff]
        %v303 = vld [vmem:[%s204 + $0xd8] sm:$0xff]
        %v304 = vld [vmem:[%s204 + $0xe0] sm:$0xff]
        %v305 = vld [vmem:[%s204 + $0xe8] sm:$0xff]
        %v306 = vld [vmem:[%s204 + $0xf0] sm:$0xff]
        %v307 = vld [vmem:[%s204 + $0xf8] sm:$0xff]
        %v340 = vunpack.c.l.b16 %v276
        %v341 = vunpack.c.h.b16 %v276
        %v342 = vunpack.c.l.b16 %v277
        %v343 = vunpack.c.h.b16 %v277
        %v344 = vunpack.c.l.b16 %v278
        %v345 = vunpack.c.h.b16 %v278
        %v346 = vunpack.c.l.b16 %v279
        %v347 = vunpack.c.h.b16 %v279
        %v348 = vunpack.c.l.b16 %v280
        %v349 = vunpack.c.h.b16 %v280
        %v350 = vunpack.c.l.b16 %v281
        %v351 = vunpack.c.h.b16 %v281
        %v352 = vunpack.c.l.b16 %v282
        %v353 = vunpack.c.h.b16 %v282
        %v354 = vunpack.c.l.b16 %v283
        %v355 = vunpack.c.h.b16 %v283
        %v356 = vunpack.c.l.b16 %v284
        %v357 = vunpack.c.h.b16 %v284
        %v358 = vunpack.c.l.b16 %v285
        %v359 = vunpack.c.h.b16 %v285
        %v360 = vunpack.c.l.b16 %v286
        %v361 = vunpack.c.h.b16 %v286
        %v362 = vunpack.c.l.b16 %v287
        %v363 = vunpack.c.h.b16 %v287
        %v364 = vunpack.c.l.b16 %v288
        %v365 = vunpack.c.h.b16 %v288
        %v366 = vunpack.c.l.b16 %v289
        %v367 = vunpack.c.h.b16 %v289
        %v368 = vunpack.c.l.b16 %v290
        %v369 = vunpack.c.h.b16 %v290
        %v370 = vunpack.c.l.b16 %v291
        %v371 = vunpack.c.h.b16 %v291
        %v372 = vunpack.c.l.b16 %v292
        %v373 = vunpack.c.h.b16 %v292
        %v374 = vunpack.c.l.b16 %v293
        %v375 = vunpack.c.h.b16 %v293
        %v376 = vunpack.c.l.b16 %v294
        %v377 = vunpack.c.h.b16 %v294
        %v378 = vunpack.c.l.b16 %v295
        %v379 = vunpack.c.h.b16 %v295
        %v380 = vunpack.c.l.b16 %v296
        %v381 = vunpack.c.h.b16 %v296
        %v382 = vunpack.c.l.b16 %v297
        %v383 = vunpack.c.h.b16 %v297
        %v384 = vunpack.c.l.b16 %v298
        %v385 = vunpack.c.h.b16 %v298
        %v386 = vunpack.c.l.b16 %v299
        %v387 = vunpack.c.h.b16 %v299
        %v388 = vunpack.c.l.b16 %v300
        %v389 = vunpack.c.h.b16 %v300
        %v390 = vunpack.c.l.b16 %v301
        %v391 = vunpack.c.h.b16 %v301
        %v392 = vunpack.c.l.b16 %v302
        %v393 = vunpack.c.h.b16 %v302
        %v394 = vunpack.c.l.b16 %v303
        %v395 = vunpack.c.h.b16 %v303
        %v396 = vunpack.c.l.b16 %v304
        %v397 = vunpack.c.h.b16 %v304
        %v398 = vunpack.c.l.b16 %v305
        %v399 = vunpack.c.h.b16 %v305
        %v400 = vunpack.c.l.b16 %v306
        %v401 = vunpack.c.h.b16 %v306
        %v402 = vunpack.c.l.b16 %v307
        %v403 = vunpack.c.h.b16 %v307
        %v404 = vpack.c.b16 %v342, %v340
        %v405 = vpack.c.b16 %v343, %v341
        %v406 = vpack.c.b16 %v346, %v344
        %v407 = vpack.c.b16 %v347, %v345
        %v408 = vpack.c.b16 %v350, %v348
        %v409 = vpack.c.b16 %v351, %v349
        %v410 = vpack.c.b16 %v354, %v352
        %v411 = vpack.c.b16 %v355, %v353
        %v412 = vpack.c.b16 %v358, %v356
        %v413 = vpack.c.b16 %v359, %v357
        %v414 = vpack.c.b16 %v362, %v360
        %v415 = vpack.c.b16 %v363, %v361
        %v416 = vpack.c.b16 %v366, %v364
        %v417 = vpack.c.b16 %v367, %v365
        %v418 = vpack.c.b16 %v370, %v368
        %v419 = vpack.c.b16 %v371, %v369
        %v420 = vpack.c.b16 %v374, %v372
        %v421 = vpack.c.b16 %v375, %v373
        %v422 = vpack.c.b16 %v378, %v376
        %v423 = vpack.c.b16 %v379, %v377
        %v424 = vpack.c.b16 %v382, %v380
        %v425 = vpack.c.b16 %v383, %v381
        %v426 = vpack.c.b16 %v386, %v384
        %v427 = vpack.c.b16 %v387, %v385
        %v428 = vpack.c.b16 %v390, %v388
        %v429 = vpack.c.b16 %v391, %v389
        %v430 = vpack.c.b16 %v394, %v392
        %v431 = vpack.c.b16 %v395, %v393
        %v432 = vpack.c.b16 %v398, %v396
        %v433 = vpack.c.b16 %v399, %v397
        %v434 = vpack.c.b16 %v402, %v400
        %v435 = vpack.c.b16 %v403, %v401
        %468 = vmatprep.subr.bf16.mxu0 %v405
        %469 = vmatpush1.bf16.msra.mxu0 %v404
        %470 = vmatprep.subr.bf16.mxu0 %v407
        %471 = vmatpush1.bf16.msra.mxu0 %v406
        %472 = vmatprep.subr.bf16.mxu0 %v409
        %473 = vmatpush1.bf16.msra.mxu0 %v408
        %474 = vmatprep.subr.bf16.mxu0 %v411
        %475 = vmatpush1.bf16.msra.mxu0 %v410
        %476 = vmatprep.subr.bf16.mxu0 %v413
        %477 = vmatpush1.bf16.msra.mxu0 %v412
        %478 = vmatprep.subr.bf16.mxu0 %v415
        %479 = vmatpush1.bf16.msra.mxu0 %v414
        %480 = vmatprep.subr.bf16.mxu0 %v417
        %481 = vmatpush1.bf16.msra.mxu0 %v416
        %482 = vmatprep.subr.bf16.mxu0 %v419
        %483 = vmatpush1.bf16.msra.mxu0 %v418
        %484 = vmatprep.subr.bf16.mxu0 %v421
        %485 = vmatpush1.bf16.msra.mxu0 %v420
        %486 = vmatprep.subr.bf16.mxu0 %v423
        %487 = vmatpush1.bf16.msra.mxu0 %v422
        %488 = vmatprep.subr.bf16.mxu0 %v425
        %489 = vmatpush1.bf16.msra.mxu0 %v424
        %490 = vmatprep.subr.bf16.mxu0 %v427
        %491 = vmatpush1.bf16.msra.mxu0 %v426
        %492 = vmatprep.subr.bf16.mxu0 %v429
        %493 = vmatpush1.bf16.msra.mxu0 %v428
        %494 = vmatprep.subr.bf16.mxu0 %v431
        %495 = vmatpush1.bf16.msra.mxu0 %v430
        %496 = vmatprep.subr.bf16.mxu0 %v433
        %497 = vmatpush1.bf16.msra.mxu0 %v432
        %498 = vmatprep.subr.bf16.mxu0 %v435
        %499 = vmatpush1.bf16.msra.mxu0 %v434
        %500 = vmatprep.mubr.bf16.mxu0 %v275
        %501 = vmatmul.mubr.bf16.gmra.mrb[0].mxu0 %v274
        %v502 = vpop.f32.mrb[0].mxu0
        %v503 = vadd.f32 0.0, %v502
        %v504 = vpop.f32.mrb[0].mxu0
        %v505 = vadd.f32 0.0, %v504
        %v506 = vpop.f32.mrb[0].mxu0
        %v507 = vadd.f32 0.0, %v506
        %v508 = vpop.f32.mrb[0].mxu0
        %v509 = vadd.f32 0.0, %v508
        %510 = vdwg.mxu0
        %v511 = vpack.c.bf16 %v507, %v503
        %v512 = vpack.c.bf16 %v509, %v505
        %v515 = vunpack.c.l.b16 %v511
        %v516 = vunpack.c.l.b16 %v512
        %v517 = vunpack.c.h.b16 %v511
        %v518 = vunpack.c.h.b16 %v512
        %v519 = vpack.c.b16 %v516, %v515
        %v520 = vpack.c.b16 %v518, %v517
        %523 = vst [vmem:[%s226] sm:$0xff] %v519
        %524 = vst [vmem:[%s226 + $0x8] sm:$0xff] %v520
        %s525 = sand.u32 %s116, 1
        %s526 = scalar_lea.sflag [#allocation4], %s525
        %s527 = sand.u32 %s116, 1
        %s528 = smul.addr %s527, 16
        %s529 = scalar_lea.vmem [#allocation7], %s528
        // Predicated region
        $region41: #{tpu_custom_call.1} parent=31 // pred_check
          %p530 = pneg %p126
        $region42: #{tpu_custom_call.1} parent=31 // pred_check_branch
          %532 = sbr.rel (%p530) target = $region44
        $region43: #{tpu_custom_call.1} parent=31 // pred_region
          %s533 = smul.u32 2, %s25
          %s534 = smul.u32 2, %s26
          %s536 = ssub.s32 256, 256
          %537 = vsyncadd %s526, %s536
          %s538 = smul.addr %s533, 6
          %s539 = sadd.s32 %s534, %s538
          %s540 = smul.addr %s539, 64
          %s541 = scalar_lea.hbm %s3, %s540
          %s542 = sshll.u32 %s529, 4
          %s543 = int_to_ptr.vmem [resolvable:$true] %s542
          %548 = dma.vmem_to_hbm [thread:$0]  %s543, 256, %s541, %s526, 128, 384, 8
        $region44: #{tpu_custom_call.1} parent=31 // pred_fallthru
          _
      $region32: #{tpu_custom_call.1} parent=5 // pred_fallthru
        _
      %p549 = scmp.le.s32.totalorder 2, %s16
      // Predicated region
      $region45: #{tpu_custom_call.1} parent=5 // pred_check
        %p550 = pneg %p549
      $region46: #{tpu_custom_call.1} parent=5 // pred_check_branch
        %552 = sbr.rel (%p550) target = $region48
      $region47: #{tpu_custom_call.1} parent=5 // pred_region
        %s553 = ssub.s32 %s16, 2
        // Predicated region
        $region49: #{tpu_custom_call.1} parent=47 // pred_check
          %p554 = pneg %p132
        $region50: #{tpu_custom_call.1} parent=47 // pred_check_branch
          %556 = sbr.rel (%p554) target = $region52
        $region51: #{tpu_custom_call.1} parent=47 // pred_region
          %s557 = sand.u32 %s117, 1
          %s558 = scalar_lea.sflag [#allocation4], %s557
          %s559 = sand.u32 %s117, 1
          %s560 = smul.addr %s559, 16
          %s561 = scalar_lea.vmem [#allocation7], %s560
          %562 = dma.done %s558, 256
        $region52: #{tpu_custom_call.1} parent=47 // pred_fallthru
          _
      $region48: #{tpu_custom_call.1} parent=5 // pred_fallthru
        _
    $region6: #{tpu_custom_call.1} parent=1 // loop_footer
      %s20 = sadd.s32 1, %s16
    $region7: #{tpu_custom_call.1} parent=1 // loop_footer_branch
      %15 = sbr.rel target = $region3
    $region8: #{tpu_custom_call.1} parent=1 // loop_exit
      _
    %563 = vsyncpa [#allocation3], 1
    %s564 = scalar_lea.sflag [#allocation3], 1
    %565 = vsyncpa %s564, 1
    %566 = vsyncpa [#allocation6], 1
    %s567 = scalar_lea.sflag [#allocation6], 1
    %568 = vsyncpa %s567, 1
    %569 = vsyncpa [#allocation4], 1
    %s570 = scalar_lea.sflag [#allocation4], 1
    %571 = vsyncpa %s570, 1

</llo_original>
